<compile_context>
chip_gen: v5e
topology: v5e:2x2
jax: 0.10.0
libtpu: 0.0.40
codegen_flags: <defaults>
</compile_context>

<pallas_src>
import jax
import jax.numpy as jnp
from jax.experimental import pallas as pl
from jax.experimental.pallas import tpu as pltpu


# ---------------------------------------------------------------------------
# Kernels
# ---------------------------------------------------------------------------
def _make_vmem_gather_kernel(block_b, num_valid_rows):
    """Small-table path: whole table resident in VMEM; scalar-indexed row loads."""

    def kernel(idx_ref, table_ref, out_ref):
        # idx_ref:   (B_pad,)        int32 SMEM (scalar prefetch)
        # table_ref: (V_pad, D)      VMEM  (single contiguous DMA, reused across steps)
        # out_ref:   (block_b, D)    VMEM  output tile
        base = pl.program_id(0) * block_b
        for j in range(block_b):
            row = idx_ref[base + j]
            # Scalar clamp on the (idle) scalar unit; PyTorch would raise on OOB.
            row = jnp.minimum(jnp.maximum(row, 0), num_valid_rows - 1)
            out_ref[pl.ds(j, 1), :] = table_ref[pl.ds(row, 1), :]

    return kernel


def _make_hbm_gather_kernel(block_b, num_valid_rows):
    """Large-table path: table stays in HBM; per-row DMAs land directly in out_ref."""

    def kernel(idx_ref, table_hbm, out_ref, sem):
        # idx_ref:   (B_pad,)        int32 SMEM (scalar prefetch)
        # table_hbm: (V_pad, D)      HBM   (never copied wholesale)
        # out_ref:   (block_b, D)    VMEM  output tile (DMA destination)
        # sem:       ()              shared DMA semaphore (all rows same size)
        base = pl.program_id(0) * block_b
        copies = []
        for j in range(block_b):
            row = idx_ref[base + j]
            row = jnp.minimum(jnp.maximum(row, 0), num_valid_rows - 1)
            cp = pltpu.make_async_copy(
                table_hbm.at[pl.ds(row, 1), :],
                out_ref.at[pl.ds(j, 1), :],
                sem,
            )
            cp.start()
            copies.append(cp)
        for cp in copies:
            cp.wait()
        # TODO(synk): for n_blocks > 1, double-buffer the gather (issue block
        # i+1's row DMAs before waiting on block i's) to hide HBM read latency.

    return kernel


# ---------------------------------------------------------------------------
# Wrapper
# ---------------------------------------------------------------------------
def pallas_embedding_lookup(
    idx,
    table,
    *,
    num_valid_rows=None,
    block_b=None,
    vmem_table_bytes=4 << 20,
    force_hbm_path=False,
):
    """idx: (B,) int labels; table: (V_pad, D). Returns (B, D) gathered rows."""
    b = idx.shape[0]
    v_rows, d = table.shape
    if num_valid_rows is None:
        num_valid_rows = v_rows

    idx = idx.astype(jnp.int32)

    if block_b is None:
        block_b = min(b, 128)
    block_b = max(1, min(block_b, b))
    n_blocks = pl.cdiv(b, block_b)
    b_pad = n_blocks * block_b
    if b_pad != b:
        # Padded rows gather row 0 and are dropped below.
        idx = jnp.pad(idx, (0, b_pad - b))

    table_bytes = v_rows * d * table.dtype.itemsize
    use_vmem_table = (table_bytes <= vmem_table_bytes) and not force_hbm_path

    if use_vmem_table:
        kernel = _make_vmem_gather_kernel(block_b, num_valid_rows)
        in_specs = [pl.BlockSpec((v_rows, d), lambda i, idx_ref: (0, 0))]
        scratch_shapes = []
    else:
        kernel = _make_hbm_gather_kernel(block_b, num_valid_rows)
        in_specs = [pl.BlockSpec(memory_space=pl.ANY)]
        scratch_shapes = [pltpu.SemaphoreType.DMA(())]

    out = pl.pallas_call(
        kernel,
        out_shape=jax.ShapeDtypeStruct((b_pad, d), table.dtype),
        grid_spec=pltpu.PrefetchScalarGridSpec(
            num_scalar_prefetch=1,  # labels land in SMEM
            grid=(n_blocks,),
            in_specs=in_specs,
            out_specs=pl.BlockSpec((block_b, d), lambda i, idx_ref: (i, 0)),
            scratch_shapes=scratch_shapes,
        ),
        compiler_params=pltpu.CompilerParams(
            # Each output block is independent -> v7x can shard across its 2 TCs.
            dimension_semantics=("parallel",),
        ),
    )(idx, table)
    return out if b_pad == b else out[:b]


# ---------------------------------------------------------------------------
# Module port
# ---------------------------------------------------------------------------
class ClassEmbedder:
    """JAX/Pallas port of the PyTorch ClassEmbedder (forward pass)."""

    def __init__(self, embed_dim, n_classes=1000, cond_drop_rate=0.1, *, key,
                 table_dtype=jnp.float32):
        self.num_classes = n_classes
        self.cond_drop_rate = cond_drop_rate
        self.embed_dim = embed_dim  # keep a multiple of 128 for lane-dense stores
        self.vocab = n_classes + 1  # rows 0..n_classes-1 real, row n_classes = null class
        # nn.Embedding default init: N(0, 1). Row count padded to a multiple of 8
        # (sublane tile); padded rows are unreachable (indices clamped to vocab).
        v_pad = -(-self.vocab // 8) * 8
        self.table = jax.random.normal(key, (v_pad, embed_dim), dtype=table_dtype)

    def __call__(self, x, *, training=False, dropout_key=None):
        # x: (B,) integer class labels.
        x = x.astype(jnp.int32)
        if self.cond_drop_rate > 0 and training:
            # Training-time conditional drop: with prob cond_drop_rate replace
            # labels by the null-class id (tiny (B,) pre-pass in plain JAX).
            mask = (
                jax.random.uniform(dropout_key, (x.shape[0],))
                < self.cond_drop_rate
            )
            x = jnp.where(mask, jnp.int32(self.num_classes), x)
        return pallas_embedding_lookup(x, self.table, num_valid_rows=self.vocab)


if __name__ == "__main__":
    key = jax.random.PRNGKey(0)
    k_table, k_labels, k_drop = jax.random.split(key, 3)

    # Small shapes: batch=16, n_classes=100, embed_dim=128 (lane-dense D).
    B, N_CLASSES, EMBED_DIM = 16, 100, 128

    embedder = ClassEmbedder(
        embed_dim=EMBED_DIM,
        n_classes=N_CLASSES,
        cond_drop_rate=0.1,
        key=k_table,
    )

    labels = jax.random.randint(k_labels, (B,), 0, N_CLASSES, dtype=jnp.int32)

    # Eval-mode forward (no drop) — matches PyTorch module.eval() behaviour.
    # Demo table is ~52 KiB, so this takes the whole-table-in-VMEM fast path.
    out_eval = jax.block_until_ready(embedder(labels, training=False))

    # Training-mode forward (with conditional class drop).
    out_train = jax.block_until_ready(
        embedder(labels, training=True, dropout_key=k_drop)
    )

    # Also exercise the large-table path (HBM-resident table, per-row DMA gather
    # straight into the output block) for coverage.
    out_hbm = jax.block_until_ready(
        pallas_embedding_lookup(
            labels, embedder.table, num_valid_rows=embedder.vocab,
            force_hbm_path=True,
        )
    )

    # Correctness checks against plain-JAX reference (pure gather).
    ref = embedder.table[labels]
    assert out_eval.shape == (B, EMBED_DIM)
    assert out_train.shape == (B, EMBED_DIM)
    assert jnp.allclose(out_eval, ref, atol=1e-6), "VMEM-path lookup mismatch"
    assert jnp.allclose(out_hbm, ref, atol=1e-6), "HBM-path lookup mismatch"

    # Every train-mode row must be either the label's row or the null-class row.
    null_row = embedder.table[N_CLASSES]
    match_label = jnp.all(jnp.isclose(out_train, ref, atol=1e-6), axis=-1)
    match_null = jnp.all(
        jnp.isclose(out_train, null_row[None, :], atol=1e-6), axis=-1
    )
    assert bool(jnp.all(match_label | match_null)), "cond-drop output mismatch"

    print("KERNEL_OK")
</pallas_src>

<mosaic_0001>
module attributes {stable_mosaic.version = 11 : i64} {
  func.func @kernel(%arg0: i32, %arg1: memref<16xi32, #tpu.memory_space<smem>>, %arg2: memref<104x128xf32, #tpu.memory_space<vmem>>, %arg3: memref<16x128xf32, #tpu.memory_space<vmem>>) attributes {dimension_semantics = [#tpu.dimension_semantics<parallel>], iteration_bounds = array<i64: 1>, scalar_prefetch = 1 : i64, scratch_operands = 0 : i64, tpu.core_type = #tpu.core_type<tc>, window_params = [{pipeline_mode = #tpu.pipeline_mode<synchronous>, transform_indices = @transform_0, window_bounds = array<i64: 104, 128>}, {transform_indices = @transform_1, window_bounds = array<i64: 16, 128>}]} {
    %c16_i32 = arith.constant 16 : i32
    %0 = arith.muli %arg0, %c16_i32 : i32
    %c0_i32 = arith.constant 0 : i32
    %1 = arith.addi %0, %c0_i32 : i32
    %2 = arith.index_cast %1 : i32 to index
    %3 = memref.load %arg1[%2] : memref<16xi32, #tpu.memory_space<smem>>
    %c0_i32_0 = arith.constant 0 : i32
    %4 = arith.maxsi %3, %c0_i32_0 : i32
    %c100_i32 = arith.constant 100 : i32
    %5 = arith.minsi %4, %c100_i32 : i32
    %6 = arith.index_cast %5 : i32 to index
    %c0 = arith.constant 0 : index
    %7 = vector.load %arg2[%6, %c0] : memref<104x128xf32, #tpu.memory_space<vmem>>, vector<1x128xf32>
    %c0_1 = arith.constant 0 : index
    %c0_2 = arith.constant 0 : index
    %8 = vector.load %arg3[%c0_1, %c0_2] : memref<16x128xf32, #tpu.memory_space<vmem>>, vector<1x128xf32>
    tpu.vector_store %arg3[%c0_1, %c0_2], %7 {strides = array<i32>} : memref<16x128xf32, #tpu.memory_space<vmem>>, vector<1x128xf32>,
    %c1_i32 = arith.constant 1 : i32
    %9 = arith.addi %0, %c1_i32 : i32
    %10 = arith.index_cast %9 : i32 to index
    %11 = memref.load %arg1[%10] : memref<16xi32, #tpu.memory_space<smem>>
    %c0_i32_3 = arith.constant 0 : i32
    %12 = arith.maxsi %11, %c0_i32_3 : i32
    %c100_i32_4 = arith.constant 100 : i32
    %13 = arith.minsi %12, %c100_i32_4 : i32
    %14 = arith.index_cast %13 : i32 to index
    %c0_5 = arith.constant 0 : index
    %15 = vector.load %arg2[%14, %c0_5] : memref<104x128xf32, #tpu.memory_space<vmem>>, vector<1x128xf32>
    %c1 = arith.constant 1 : index
    %c0_6 = arith.constant 0 : index
    %16 = vector.load %arg3[%c1, %c0_6] : memref<16x128xf32, #tpu.memory_space<vmem>>, vector<1x128xf32>
    tpu.vector_store %arg3[%c1, %c0_6], %15 {strides = array<i32>} : memref<16x128xf32, #tpu.memory_space<vmem>>, vector<1x128xf32>,
    %c2_i32 = arith.constant 2 : i32
    %17 = arith.addi %0, %c2_i32 : i32
    %18 = arith.index_cast %17 : i32 to index
    %19 = memref.load %arg1[%18] : memref<16xi32, #tpu.memory_space<smem>>
    %c0_i32_7 = arith.constant 0 : i32
    %20 = arith.maxsi %19, %c0_i32_7 : i32
    %c100_i32_8 = arith.constant 100 : i32
    %21 = arith.minsi %20, %c100_i32_8 : i32
    %22 = arith.index_cast %21 : i32 to index
    %c0_9 = arith.constant 0 : index
    %23 = vector.load %arg2[%22, %c0_9] : memref<104x128xf32, #tpu.memory_space<vmem>>, vector<1x128xf32>
    %c2 = arith.constant 2 : index
    %c0_10 = arith.constant 0 : index
    %24 = vector.load %arg3[%c2, %c0_10] : memref<16x128xf32, #tpu.memory_space<vmem>>, vector<1x128xf32>
    tpu.vector_store %arg3[%c2, %c0_10], %23 {strides = array<i32>} : memref<16x128xf32, #tpu.memory_space<vmem>>, vector<1x128xf32>,
    %c3_i32 = arith.constant 3 : i32
    %25 = arith.addi %0, %c3_i32 : i32
    %26 = arith.index_cast %25 : i32 to index
    %27 = memref.load %arg1[%26] : memref<16xi32, #tpu.memory_space<smem>>
    %c0_i32_11 = arith.constant 0 : i32
    %28 = arith.maxsi %27, %c0_i32_11 : i32
    %c100_i32_12 = arith.constant 100 : i32
    %29 = arith.minsi %28, %c100_i32_12 : i32
    %30 = arith.index_cast %29 : i32 to index
    %c0_13 = arith.constant 0 : index
    %31 = vector.load %arg2[%30, %c0_13] : memref<104x128xf32, #tpu.memory_space<vmem>>, vector<1x128xf32>
    %c3 = arith.constant 3 : index
    %c0_14 = arith.constant 0 : index
    %32 = vector.load %arg3[%c3, %c0_14] : memref<16x128xf32, #tpu.memory_space<vmem>>, vector<1x128xf32>
    tpu.vector_store %arg3[%c3, %c0_14], %31 {strides = array<i32>} : memref<16x128xf32, #tpu.memory_space<vmem>>, vector<1x128xf32>,
    %c4_i32 = arith.constant 4 : i32
    %33 = arith.addi %0, %c4_i32 : i32
    %34 = arith.index_cast %33 : i32 to index
    %35 = memref.load %arg1[%34] : memref<16xi32, #tpu.memory_space<smem>>
    %c0_i32_15 = arith.constant 0 : i32
    %36 = arith.maxsi %35, %c0_i32_15 : i32
    %c100_i32_16 = arith.constant 100 : i32
    %37 = arith.minsi %36, %c100_i32_16 : i32
    %38 = arith.index_cast %37 : i32 to index
    %c0_17 = arith.constant 0 : index
    %39 = vector.load %arg2[%38, %c0_17] : memref<104x128xf32, #tpu.memory_space<vmem>>, vector<1x128xf32>
    %c4 = arith.constant 4 : index
    %c0_18 = arith.constant 0 : index
    %40 = vector.load %arg3[%c4, %c0_18] : memref<16x128xf32, #tpu.memory_space<vmem>>, vector<1x128xf32>
    tpu.vector_store %arg3[%c4, %c0_18], %39 {strides = array<i32>} : memref<16x128xf32, #tpu.memory_space<vmem>>, vector<1x128xf32>,
    %c5_i32 = arith.constant 5 : i32
    %41 = arith.addi %0, %c5_i32 : i32
    %42 = arith.index_cast %41 : i32 to index
    %43 = memref.load %arg1[%42] : memref<16xi32, #tpu.memory_space<smem>>
    %c0_i32_19 = arith.constant 0 : i32
    %44 = arith.maxsi %43, %c0_i32_19 : i32
    %c100_i32_20 = arith.constant 100 : i32
    %45 = arith.minsi %44, %c100_i32_20 : i32
    %46 = arith.index_cast %45 : i32 to index
    %c0_21 = arith.constant 0 : index
    %47 = vector.load %arg2[%46, %c0_21] : memref<104x128xf32, #tpu.memory_space<vmem>>, vector<1x128xf32>
    %c5 = arith.constant 5 : index
    %c0_22 = arith.constant 0 : index
    %48 = vector.load %arg3[%c5, %c0_22] : memref<16x128xf32, #tpu.memory_space<vmem>>, vector<1x128xf32>
    tpu.vector_store %arg3[%c5, %c0_22], %47 {strides = array<i32>} : memref<16x128xf32, #tpu.memory_space<vmem>>, vector<1x128xf32>,
    %c6_i32 = arith.constant 6 : i32
    %49 = arith.addi %0, %c6_i32 : i32
    %50 = arith.index_cast %49 : i32 to index
    %51 = memref.load %arg1[%50] : memref<16xi32, #tpu.memory_space<smem>>
    %c0_i32_23 = arith.constant 0 : i32
    %52 = arith.maxsi %51, %c0_i32_23 : i32
    %c100_i32_24 = arith.constant 100 : i32
    %53 = arith.minsi %52, %c100_i32_24 : i32
    %54 = arith.index_cast %53 : i32 to index
    %c0_25 = arith.constant 0 : index
    %55 = vector.load %arg2[%54, %c0_25] : memref<104x128xf32, #tpu.memory_space<vmem>>, vector<1x128xf32>
    %c6 = arith.constant 6 : index
    %c0_26 = arith.constant 0 : index
    %56 = vector.load %arg3[%c6, %c0_26] : memref<16x128xf32, #tpu.memory_space<vmem>>, vector<1x128xf32>
    tpu.vector_store %arg3[%c6, %c0_26], %55 {strides = array<i32>} : memref<16x128xf32, #tpu.memory_space<vmem>>, vector<1x128xf32>,
    %c7_i32 = arith.constant 7 : i32
    %57 = arith.addi %0, %c7_i32 : i32
    %58 = arith.index_cast %57 : i32 to index
    %59 = memref.load %arg1[%58] : memref<16xi32, #tpu.memory_space<smem>>
    %c0_i32_27 = arith.constant 0 : i32
    %60 = arith.maxsi %59, %c0_i32_27 : i32
    %c100_i32_28 = arith.constant 100 : i32
    %61 = arith.minsi %60, %c100_i32_28 : i32
    %62 = arith.index_cast %61 : i32 to index
    %c0_29 = arith.constant 0 : index
    %63 = vector.load %arg2[%62, %c0_29] : memref<104x128xf32, #tpu.memory_space<vmem>>, vector<1x128xf32>
    %c7 = arith.constant 7 : index
    %c0_30 = arith.constant 0 : index
    %64 = vector.load %arg3[%c7, %c0_30] : memref<16x128xf32, #tpu.memory_space<vmem>>, vector<1x128xf32>
    tpu.vector_store %arg3[%c7, %c0_30], %63 {strides = array<i32>} : memref<16x128xf32, #tpu.memory_space<vmem>>, vector<1x128xf32>,
    %c8_i32 = arith.constant 8 : i32
    %65 = arith.addi %0, %c8_i32 : i32
    %66 = arith.index_cast %65 : i32 to index
    %67 = memref.load %arg1[%66] : memref<16xi32, #tpu.memory_space<smem>>
    %c0_i32_31 = arith.constant 0 : i32
    %68 = arith.maxsi %67, %c0_i32_31 : i32
    %c100_i32_32 = arith.constant 100 : i32
    %69 = arith.minsi %68, %c100_i32_32 : i32
    %70 = arith.index_cast %69 : i32 to index
    %c0_33 = arith.constant 0 : index
    %71 = vector.load %arg2[%70, %c0_33] : memref<104x128xf32, #tpu.memory_space<vmem>>, vector<1x128xf32>
    %c8 = arith.constant 8 : index
    %c0_34 = arith.constant 0 : index
    %72 = vector.load %arg3[%c8, %c0_34] : memref<16x128xf32, #tpu.memory_space<vmem>>, vector<1x128xf32>
    tpu.vector_store %arg3[%c8, %c0_34], %71 {strides = array<i32>} : memref<16x128xf32, #tpu.memory_space<vmem>>, vector<1x128xf32>,
    %c9_i32 = arith.constant 9 : i32
    %73 = arith.addi %0, %c9_i32 : i32
    %74 = arith.index_cast %73 : i32 to index
    %75 = memref.load %arg1[%74] : memref<16xi32, #tpu.memory_space<smem>>
    %c0_i32_35 = arith.constant 0 : i32
    %76 = arith.maxsi %75, %c0_i32_35 : i32
    %c100_i32_36 = arith.constant 100 : i32
    %77 = arith.minsi %76, %c100_i32_36 : i32
    %78 = arith.index_cast %77 : i32 to index
    %c0_37 = arith.constant 0 : index
    %79 = vector.load %arg2[%78, %c0_37] : memref<104x128xf32, #tpu.memory_space<vmem>>, vector<1x128xf32>
    %c9 = arith.constant 9 : index
    %c0_38 = arith.constant 0 : index
    %80 = vector.load %arg3[%c9, %c0_38] : memref<16x128xf32, #tpu.memory_space<vmem>>, vector<1x128xf32>
    tpu.vector_store %arg3[%c9, %c0_38], %79 {strides = array<i32>} : memref<16x128xf32, #tpu.memory_space<vmem>>, vector<1x128xf32>,
    %c10_i32 = arith.constant 10 : i32
    %81 = arith.addi %0, %c10_i32 : i32
    %82 = arith.index_cast %81 : i32 to index
    %83 = memref.load %arg1[%82] : memref<16xi32, #tpu.memory_space<smem>>
    %c0_i32_39 = arith.constant 0 : i32
    %84 = arith.maxsi %83, %c0_i32_39 : i32
    %c100_i32_40 = arith.constant 100 : i32
    %85 = arith.minsi %84, %c100_i32_40 : i32
    %86 = arith.index_cast %85 : i32 to index
    %c0_41 = arith.constant 0 : index
    %87 = vector.load %arg2[%86, %c0_41] : memref<104x128xf32, #tpu.memory_space<vmem>>, vector<1x128xf32>
    %c10 = arith.constant 10 : index
    %c0_42 = arith.constant 0 : index
    %88 = vector.load %arg3[%c10, %c0_42] : memref<16x128xf32, #tpu.memory_space<vmem>>, vector<1x128xf32>
    tpu.vector_store %arg3[%c10, %c0_42], %87 {strides = array<i32>} : memref<16x128xf32, #tpu.memory_space<vmem>>, vector<1x128xf32>,
    %c11_i32 = arith.constant 11 : i32
    %89 = arith.addi %0, %c11_i32 : i32
    %90 = arith.index_cast %89 : i32 to index
    %91 = memref.load %arg1[%90] : memref<16xi32, #tpu.memory_space<smem>>
    %c0_i32_43 = arith.constant 0 : i32
    %92 = arith.maxsi %91, %c0_i32_43 : i32
    %c100_i32_44 = arith.constant 100 : i32
    %93 = arith.minsi %92, %c100_i32_44 : i32
    %94 = arith.index_cast %93 : i32 to index
    %c0_45 = arith.constant 0 : index
    %95 = vector.load %arg2[%94, %c0_45] : memref<104x128xf32, #tpu.memory_space<vmem>>, vector<1x128xf32>
    %c11 = arith.constant 11 : index
    %c0_46 = arith.constant 0 : index
    %96 = vector.load %arg3[%c11, %c0_46] : memref<16x128xf32, #tpu.memory_space<vmem>>, vector<1x128xf32>
    tpu.vector_store %arg3[%c11, %c0_46], %95 {strides = array<i32>} : memref<16x128xf32, #tpu.memory_space<vmem>>, vector<1x128xf32>,
    %c12_i32 = arith.constant 12 : i32
    %97 = arith.addi %0, %c12_i32 : i32
    %98 = arith.index_cast %97 : i32 to index
    %99 = memref.load %arg1[%98] : memref<16xi32, #tpu.memory_space<smem>>
    %c0_i32_47 = arith.constant 0 : i32
    %100 = arith.maxsi %99, %c0_i32_47 : i32
    %c100_i32_48 = arith.constant 100 : i32
    %101 = arith.minsi %100, %c100_i32_48 : i32
    %102 = arith.index_cast %101 : i32 to index
    %c0_49 = arith.constant 0 : index
    %103 = vector.load %arg2[%102, %c0_49] : memref<104x128xf32, #tpu.memory_space<vmem>>, vector<1x128xf32>
    %c12 = arith.constant 12 : index
    %c0_50 = arith.constant 0 : index
    %104 = vector.load %arg3[%c12, %c0_50] : memref<16x128xf32, #tpu.memory_space<vmem>>, vector<1x128xf32>
    tpu.vector_store %arg3[%c12, %c0_50], %103 {strides = array<i32>} : memref<16x128xf32, #tpu.memory_space<vmem>>, vector<1x128xf32>,
    %c13_i32 = arith.constant 13 : i32
    %105 = arith.addi %0, %c13_i32 : i32
    %106 = arith.index_cast %105 : i32 to index
    %107 = memref.load %arg1[%106] : memref<16xi32, #tpu.memory_space<smem>>
    %c0_i32_51 = arith.constant 0 : i32
    %108 = arith.maxsi %107, %c0_i32_51 : i32
    %c100_i32_52 = arith.constant 100 : i32
    %109 = arith.minsi %108, %c100_i32_52 : i32
    %110 = arith.index_cast %109 : i32 to index
    %c0_53 = arith.constant 0 : index
    %111 = vector.load %arg2[%110, %c0_53] : memref<104x128xf32, #tpu.memory_space<vmem>>, vector<1x128xf32>
    %c13 = arith.constant 13 : index
    %c0_54 = arith.constant 0 : index
    %112 = vector.load %arg3[%c13, %c0_54] : memref<16x128xf32, #tpu.memory_space<vmem>>, vector<1x128xf32>
    tpu.vector_store %arg3[%c13, %c0_54], %111 {strides = array<i32>} : memref<16x128xf32, #tpu.memory_space<vmem>>, vector<1x128xf32>,
    %c14_i32 = arith.constant 14 : i32
    %113 = arith.addi %0, %c14_i32 : i32
    %114 = arith.index_cast %113 : i32 to index
    %115 = memref.load %arg1[%114] : memref<16xi32, #tpu.memory_space<smem>>
    %c0_i32_55 = arith.constant 0 : i32
    %116 = arith.maxsi %115, %c0_i32_55 : i32
    %c100_i32_56 = arith.constant 100 : i32
    %117 = arith.minsi %116, %c100_i32_56 : i32
    %118 = arith.index_cast %117 : i32 to index
    %c0_57 = arith.constant 0 : index
    %119 = vector.load %arg2[%118, %c0_57] : memref<104x128xf32, #tpu.memory_space<vmem>>, vector<1x128xf32>
    %c14 = arith.constant 14 : index
    %c0_58 = arith.constant 0 : index
    %120 = vector.load %arg3[%c14, %c0_58] : memref<16x128xf32, #tpu.memory_space<vmem>>, vector<1x128xf32>
    tpu.vector_store %arg3[%c14, %c0_58], %119 {strides = array<i32>} : memref<16x128xf32, #tpu.memory_space<vmem>>, vector<1x128xf32>,
    %c15_i32 = arith.constant 15 : i32
    %121 = arith.addi %0, %c15_i32 : i32
    %122 = arith.index_cast %121 : i32 to index
    %123 = memref.load %arg1[%122] : memref<16xi32, #tpu.memory_space<smem>>
    %c0_i32_59 = arith.constant 0 : i32
    %124 = arith.maxsi %123, %c0_i32_59 : i32
    %c100_i32_60 = arith.constant 100 : i32
    %125 = arith.minsi %124, %c100_i32_60 : i32
    %126 = arith.index_cast %125 : i32 to index
    %c0_61 = arith.constant 0 : index
    %127 = vector.load %arg2[%126, %c0_61] : memref<104x128xf32, #tpu.memory_space<vmem>>, vector<1x128xf32>
    %c15 = arith.constant 15 : index
    %c0_62 = arith.constant 0 : index
    %128 = vector.load %arg3[%c15, %c0_62] : memref<16x128xf32, #tpu.memory_space<vmem>>, vector<1x128xf32>
    tpu.vector_store %arg3[%c15, %c0_62], %127 {strides = array<i32>} : memref<16x128xf32, #tpu.memory_space<vmem>>, vector<1x128xf32>,
    return
  }
  func.func @transform_0(%arg0: i32, %arg1: memref<16xi32, #tpu.memory_space<smem>>) -> (i32, i32) {
    %c0_i32 = arith.constant 0 : i32
    %c0_i32_0 = arith.constant 0 : i32
    %c0_i32_1 = arith.constant 0 : i32
    return %c0_i32, %c0_i32_0 : i32, i32
  }
  func.func @transform_1(%arg0: i32, %arg1: memref<16xi32, #tpu.memory_space<smem>>) -> (i32, i32) {
    %c0_i32 = arith.constant 0 : i32
    %c0_i32_0 = arith.constant 0 : i32
    return %arg0, %c0_i32 : i32, i32
  }
}

</mosaic_0001>

<llo_original>
// kernel: tpu_custom_call.1
$region0: #{tpu_custom_call.1}
  #allocation0 [shape = 'u32[]', space=smem, size = 0x4, offset = 0x4, fixed_abs, tag = 'smem constant byte address 0x4 - core index']
  #allocation1 [shape = 'u32[72,128]{1,0:T(1,128)}', space=vmem, size = 0x9000, scoped, tag = 'internal scratch']
  #allocation2 [shape = 's32[1]{0}', space=sflag, size = 0x4, scoped, tag = 'scoped memory for tpu_custom_call.1']
  #allocation3 [shape = 'u8[512]{0}', space=smem, size = 0x200, scoped, tag = 'prefetched SMEM operand 0']
  %s0 = inlined_call_operand.hbm [shape: s32[16], index: 0, kind: input, shape index: {}]
  %s1 = inlined_call_operand.hbm [shape: f32[104,128], index: 1, kind: input, shape index: {}]
  %s2 = inlined_call_operand.hbm [shape: f32[16,128], index: 2, kind: output, shape index: {}]
  %s3 = sld [smem:[#allocation0]]
  $region18: #{tpu_custom_call.1} parent=0
    _
  %s5 = ssub.s32 1, %s3
  %s6 = scalar_select 0, %s5, %s3
  %s8 = sshll.u32 %s0, 4
  %s9 = int_to_ptr.hbm [resolvable:$true] %s8
  %11 = dma.hbm_to_smem %s9, 16, [#allocation3], [#allocation2]
  %13 = dma.done [#allocation2], 16
  %14 = sfence
  $region1: #{tpu_custom_call.1} parent=0
    #allocation4 [shape = 'u8[53248]{0}', space=vmem, size = 0xd000, scoped, tag = 'input window, operand 1, single buffered']
    #allocation5 [shape = 's32[1]{0}', space=sflag, size = 0x4, scoped, tag = 'scoped memory for tpu_custom_call.1']
    #allocation6 [shape = 's32[1]{0}', space=sflag, size = 0x4, scoped, tag = 'scoped memory for tpu_custom_call.1']
    #allocation7 [shape = 'u8[8192]{0}', space=vmem, size = 0x2000, scoped, tag = 'output window, operand 0, single buffered']
    %15 = vsyncpa [#allocation5], 0
    %16 = vsyncpa [#allocation6], 0
    // Predicated region
    $region2: #{tpu_custom_call.1} parent=1 // pred_check
      _
    $region3: #{tpu_custom_call.1} parent=1 // pred_check_branch
      %18 = sbr.rel (0) target = $region5
    $region4: #{tpu_custom_call.1} parent=1 // pred_region
      %20 = vsyncadd [#allocation5], 0
      %s21 = sshll.u32 %s1, 4
      %s22 = int_to_ptr.hbm [resolvable:$true] %s21
      %s23 = sshll.u32 [#allocation4], 4
      %s24 = int_to_ptr.vmem [resolvable:$true] %s23
      %29 = dma.hbm_to_vmem [thread:$0]  %s22, 1664, %s24, [#allocation5], 128, 128, 8
    $region5: #{tpu_custom_call.1} parent=1 // pred_fallthru
      _
    // Predicated region
    $region6: #{tpu_custom_call.1} parent=1 // pred_check
      _
    $region7: #{tpu_custom_call.1} parent=1 // pred_check_branch
      %31 = sbr.rel (0) target = $region9
    $region8: #{tpu_custom_call.1} parent=1 // pred_region
      %33 = dma.done [#allocation5], 1664
    $region9: #{tpu_custom_call.1} parent=1 // pred_fallthru
      _
    %s34 = smul.u32 0, 16
    %s35 = sld [smem:[#allocation3 + %s34]]
    %p36 = scmp.gt.s32.totalorder %s35, 0
    %s37 = scalar_select %p36, %s35, 0
    %p38 = scmp.lt.s32.totalorder %s37, 100
    %s39 = scalar_select %p38, %s37, 100
    %s40 = scalar_lea.vmem [#allocation4], %s39
    %v41 = vld [vmem:[%s40] sm:$0x1]
    %42 = vst [vmem:[#allocation7] sm:$0x1] %v41
    %s43 = sadd.s32 %s34, 1
    %s44 = sld [smem:[#allocation3 + %s43]]
    %p45 = scmp.gt.s32.totalorder %s44, 0
    %s46 = scalar_select %p45, %s44, 0
    %p47 = scmp.lt.s32.totalorder %s46, 100
    %s48 = scalar_select %p47, %s46, 100
    %s49 = scalar_lea.vmem [#allocation4], %s48
    %v50 = vld [vmem:[%s49] sm:$0x1]
    %51 = vst [vmem:[#allocation7 + $0x1] sm:$0x1] %v50
    %s52 = sadd.s32 %s34, 2
    %s53 = sld [smem:[#allocation3 + %s52]]
    %p54 = scmp.gt.s32.totalorder %s53, 0
    %s55 = scalar_select %p54, %s53, 0
    %p56 = scmp.lt.s32.totalorder %s55, 100
    %s57 = scalar_select %p56, %s55, 100
    %s58 = scalar_lea.vmem [#allocation4], %s57
    %v59 = vld [vmem:[%s58] sm:$0x1]
    %60 = vst [vmem:[#allocation7 + $0x2] sm:$0x1] %v59
    %s61 = sadd.s32 %s34, 3
    %s62 = sld [smem:[#allocation3 + %s61]]
    %p63 = scmp.gt.s32.totalorder %s62, 0
    %s64 = scalar_select %p63, %s62, 0
    %p65 = scmp.lt.s32.totalorder %s64, 100
    %s66 = scalar_select %p65, %s64, 100
    %s67 = scalar_lea.vmem [#allocation4], %s66
    %v68 = vld [vmem:[%s67] sm:$0x1]
    %69 = vst [vmem:[#allocation7 + $0x3] sm:$0x1] %v68
    %s70 = sadd.s32 %s34, 4
    %s71 = sld [smem:[#allocation3 + %s70]]
    %p72 = scmp.gt.s32.totalorder %s71, 0
    %s73 = scalar_select %p72, %s71, 0
    %p74 = scmp.lt.s32.totalorder %s73, 100
    %s75 = scalar_select %p74, %s73, 100
    %s76 = scalar_lea.vmem [#allocation4], %s75
    %v77 = vld [vmem:[%s76] sm:$0x1]
    %78 = vst [vmem:[#allocation7 + $0x4] sm:$0x1] %v77
    %s79 = sadd.s32 %s34, 5
    %s80 = sld [smem:[#allocation3 + %s79]]
    %p81 = scmp.gt.s32.totalorder %s80, 0
    %s82 = scalar_select %p81, %s80, 0
    %p83 = scmp.lt.s32.totalorder %s82, 100
    %s84 = scalar_select %p83, %s82, 100
    %s85 = scalar_lea.vmem [#allocation4], %s84
    %v86 = vld [vmem:[%s85] sm:$0x1]
    %87 = vst [vmem:[#allocation7 + $0x5] sm:$0x1] %v86
    %s88 = sadd.s32 %s34, 6
    %s89 = sld [smem:[#allocation3 + %s88]]
    %p90 = scmp.gt.s32.totalorder %s89, 0
    %s91 = scalar_select %p90, %s89, 0
    %p92 = scmp.lt.s32.totalorder %s91, 100
    %s93 = scalar_select %p92, %s91, 100
    %s94 = scalar_lea.vmem [#allocation4], %s93
    %v95 = vld [vmem:[%s94] sm:$0x1]
    %96 = vst [vmem:[#allocation7 + $0x6] sm:$0x1] %v95
    %s97 = sadd.s32 %s34, 7
    %s98 = sld [smem:[#allocation3 + %s97]]
    %p99 = scmp.gt.s32.totalorder %s98, 0
    %s100 = scalar_select %p99, %s98, 0
    %p101 = scmp.lt.s32.totalorder %s100, 100
    %s102 = scalar_select %p101, %s100, 100
    %s103 = scalar_lea.vmem [#allocation4], %s102
    %v104 = vld [vmem:[%s103] sm:$0x1]
    %105 = vst [vmem:[#allocation7 + $0x7] sm:$0x1] %v104
    %s106 = sadd.s32 %s34, 8
    %s107 = sld [smem:[#allocation3 + %s106]]
    %p108 = scmp.gt.s32.totalorder %s107, 0
    %s109 = scalar_select %p108, %s107, 0
    %p110 = scmp.lt.s32.totalorder %s109, 100
    %s111 = scalar_select %p110, %s109, 100
    %s112 = scalar_lea.vmem [#allocation4], %s111
    %v113 = vld [vmem:[%s112] sm:$0x1]
    %114 = vst [vmem:[#allocation7 + $0x8] sm:$0x1] %v113
    %s115 = sadd.s32 %s34, 9
    %s116 = sld [smem:[#allocation3 + %s115]]
    %p117 = scmp.gt.s32.totalorder %s116, 0
    %s118 = scalar_select %p117, %s116, 0
    %p119 = scmp.lt.s32.totalorder %s118, 100
    %s120 = scalar_select %p119, %s118, 100
    %s121 = scalar_lea.vmem [#allocation4], %s120
    %v122 = vld [vmem:[%s121] sm:$0x1]
    %123 = vst [vmem:[#allocation7 + $0x9] sm:$0x1] %v122
    %s124 = sadd.s32 %s34, 10
    %s125 = sld [smem:[#allocation3 + %s124]]
    %p126 = scmp.gt.s32.totalorder %s125, 0
    %s127 = scalar_select %p126, %s125, 0
    %p128 = scmp.lt.s32.totalorder %s127, 100
    %s129 = scalar_select %p128, %s127, 100
    %s130 = scalar_lea.vmem [#allocation4], %s129
    %v131 = vld [vmem:[%s130] sm:$0x1]
    %132 = vst [vmem:[#allocation7 + $0xa] sm:$0x1] %v131
    %s133 = sadd.s32 %s34, 11
    %s134 = sld [smem:[#allocation3 + %s133]]
    %p135 = scmp.gt.s32.totalorder %s134, 0
    %s136 = scalar_select %p135, %s134, 0
    %p137 = scmp.lt.s32.totalorder %s136, 100
    %s138 = scalar_select %p137, %s136, 100
    %s139 = scalar_lea.vmem [#allocation4], %s138
    %v140 = vld [vmem:[%s139] sm:$0x1]
    %141 = vst [vmem:[#allocation7 + $0xb] sm:$0x1] %v140
    %s142 = sadd.s32 %s34, 12
    %s143 = sld [smem:[#allocation3 + %s142]]
    %p144 = scmp.gt.s32.totalorder %s143, 0
    %s145 = scalar_select %p144, %s143, 0
    %p146 = scmp.lt.s32.totalorder %s145, 100
    %s147 = scalar_select %p146, %s145, 100
    %s148 = scalar_lea.vmem [#allocation4], %s147
    %v149 = vld [vmem:[%s148] sm:$0x1]
    %150 = vst [vmem:[#allocation7 + $0xc] sm:$0x1] %v149
    %s151 = sadd.s32 %s34, 13
    %s152 = sld [smem:[#allocation3 + %s151]]
    %p153 = scmp.gt.s32.totalorder %s152, 0
    %s154 = scalar_select %p153, %s152, 0
    %p155 = scmp.lt.s32.totalorder %s154, 100
    %s156 = scalar_select %p155, %s154, 100
    %s157 = scalar_lea.vmem [#allocation4], %s156
    %v158 = vld [vmem:[%s157] sm:$0x1]
    %159 = vst [vmem:[#allocation7 + $0xd] sm:$0x1] %v158
    %s160 = sadd.s32 %s34, 14
    %s161 = sld [smem:[#allocation3 + %s160]]
    %p162 = scmp.gt.s32.totalorder %s161, 0
    %s163 = scalar_select %p162, %s161, 0
    %p164 = scmp.lt.s32.totalorder %s163, 100
    %s165 = scalar_select %p164, %s163, 100
    %s166 = scalar_lea.vmem [#allocation4], %s165
    %v167 = vld [vmem:[%s166] sm:$0x1]
    %168 = vst [vmem:[#allocation7 + $0xe] sm:$0x1] %v167
    %s169 = sadd.s32 %s34, 15
    %s170 = sld [smem:[#allocation3 + %s169]]
    %p171 = scmp.gt.s32.totalorder %s170, 0
    %s172 = scalar_select %p171, %s170, 0
    %p173 = scmp.lt.s32.totalorder %s172, 100
    %s174 = scalar_select %p173, %s172, 100
    %s175 = scalar_lea.vmem [#allocation4], %s174
    %v176 = vld [vmem:[%s175] sm:$0x1]
    %177 = vst [vmem:[#allocation7 + $0xf] sm:$0x1] %v176
    // Predicated region
    $region10: #{tpu_custom_call.1} parent=1 // pred_check
      _
    $region11: #{tpu_custom_call.1} parent=1 // pred_check_branch
      %179 = sbr.rel (0) target = $region13
    $region12: #{tpu_custom_call.1} parent=1 // pred_region
      %181 = vsyncadd [#allocation6], 0
      %s182 = sshll.u32 [#allocation7], 4
      %s183 = int_to_ptr.vmem [resolvable:$true] %s182
      %s184 = sshll.u32 %s2, 4
      %s185 = int_to_ptr.hbm [resolvable:$true] %s184
      %190 = dma.vmem_to_hbm [thread:$0]  %s183, 256, %s185, [#allocation6], 128, 128, 8
    $region13: #{tpu_custom_call.1} parent=1 // pred_fallthru
      _
    // Predicated region
    $region14: #{tpu_custom_call.1} parent=1 // pred_check
      _
    $region15: #{tpu_custom_call.1} parent=1 // pred_check_branch
      %192 = sbr.rel (0) target = $region17
    $region16: #{tpu_custom_call.1} parent=1 // pred_region
      %194 = dma.done [#allocation6], 256
    $region17: #{tpu_custom_call.1} parent=1 // pred_fallthru
      _
    %195 = vsyncpa [#allocation5], 1
    %196 = vsyncpa [#allocation6], 1

</llo_original>
